<compile_context>
chip_gen: v5e
topology: v5e:2x2
jax: 0.10.0
libtpu: 0.0.40
codegen_flags: <defaults>
</compile_context>

<pallas_src>
import functools
import math

import jax
import jax.numpy as jnp
from jax.experimental import pallas as pl
from jax.experimental.pallas import tpu as pltpu


def _double_mha_kernel(x_ref, wqt_ref, e_ref, a_ref, s_ref, out_ref, ct_ref):
    # x_ref:   (Bt, F, T)   activation block, native (B, F, T) layout (stream dtype)
    # wqt_ref: (H, F)       block-diag query, pre-scaled by 1/sqrt(H)   (stream dtype)
    # e_ref:   (H, F)       block-diag 0/1 mask == head->feature expansion (f32)
    # a_ref:   (F, H)       block-diag att weights (f32)
    # s_ref:   (F, hs)      fold F (head-major) back to hs (f32)
    # out_ref: (Bt, hs)     output block (leading grid dim squeezed)
    # ct_ref:  (Bt, F)      f32 VMEM scratch: pooled head-major rows for this batch tile
    bt = x_ref.shape[0]
    wqt = wqt_ref[...]
    e = e_ref[...]

    def body(b, carry):
        x_b = x_ref[b]                                                   # (F, T)

        # ---- utterance attention: (H, T) scores, softmax over the lane (time) axis ----
        scores = jnp.dot(wqt, x_b, preferred_element_type=jnp.float32)   # (H, T)
        m = jnp.max(scores, axis=-1, keepdims=True)
        ex = jnp.exp(scores - m)
        p = ex * pl.reciprocal(jnp.sum(ex, axis=-1, keepdims=True), approx=True)

        # ---- per-head pooling on the MXU: p @ x_b^T -> (H, F) ----
        ct_hf = jax.lax.dot_general(
            p.astype(x_b.dtype), x_b,
            dimension_numbers=(((1,), (1,)), ((), ())),
            preferred_element_type=jnp.float32)                          # (H, F)
        # keep only diagonal head blocks, fold to one head-major row (== ct.view(-1))
        ct_ref[pl.ds(b, 1), :] = jnp.sum(ct_hf * e, axis=0, keepdims=True)
        return carry

    jax.lax.fori_loop(0, bt, body, 0)

    # ---- batched head attention epilogue (once per grid step, Bt rows at a time) ----
    ct = ct_ref[...]                                                     # (Bt, F) f32
    s2 = jnp.dot(ct, a_ref[...], preferred_element_type=jnp.float32)     # (Bt, H)
    m2 = jnp.max(s2, axis=-1, keepdims=True)
    e2 = jnp.exp(s2 - m2)
    p2 = e2 * pl.reciprocal(jnp.sum(e2, axis=-1, keepdims=True), approx=True)
    p2f = jnp.dot(p2, e, preferred_element_type=jnp.float32)             # (Bt, F)
    out = jnp.dot(ct * p2f, s_ref[...], preferred_element_type=jnp.float32)  # (Bt, hs)
    out_ref[...] = out.astype(out_ref.dtype)                             # single store


def _pick_block_batch(B, feat, T, itemsize):
    """Pick batch-tile size: ~4 MiB x-blocks, <=40 MiB double-buffered, >=4 steps."""
    per_elem = max(1, feat * T * itemsize)
    target_block = 4 << 20
    dbuf_budget = 40 << 20                      # v7x-safe (64 MiB physical VMEM/core)
    bt = min(-(-target_block // per_elem), dbuf_budget // (2 * per_elem))
    bt = max(1, bt)
    # keep >= 4 grid steps when B allows (DMA/compute overlap + megacore split)
    while bt > 8 and -(-B // bt) < 4:
        bt //= 2
    return max(1, min(bt, B))


@functools.partial(jax.jit,
                   static_argnames=("heads_number", "block_batch", "stream_dtype"))
def double_mha_forward(x, query, att, heads_number, *, block_batch=None,
                       stream_dtype=jnp.bfloat16):
    """x: (B, feat_in, T); query: (hs, H); att: (hs, 1). Returns (B, hs)."""
    B, feat, T = x.shape
    H = heads_number
    hs = feat // H
    assert feat == H * hs

    out_dtype = x.dtype
    if stream_dtype is not None:            # halve HBM traffic on the dominant stream
        x = x.astype(stream_dtype)
    in_dtype = x.dtype
    in_item = jnp.dtype(in_dtype).itemsize

    # --- constant head-structure matrices (tiny; constant-folded / hoisted under jit) ---
    f32 = jnp.float32
    eye_h = jnp.eye(H, dtype=f32)
    # d_k = query.size(-1) = heads_number in the torch module; fold 1/sqrt(H) into Wq.
    q_scaled = query.astype(f32) / math.sqrt(H)
    # WqT[h, h*hs+d] = query[d, h] / sqrt(H)
    WqT = (eye_h[:, :, None] * q_scaled.T[:, None, :]).reshape(H, feat).astype(in_dtype)
    # E[h, h*hs+d] = delta(h, h')  (block-diag mask AND per-head expansion)
    E = jnp.repeat(eye_h, hs, axis=1)                                   # (H, F)
    # A[h*hs+d, h'] = att[d] * delta(h, h')
    A = (att.astype(f32)[:, 0][None, :, None] * eye_h[:, None, :]).reshape(feat, H)
    # S[h*hs+d, d'] = delta(d, d')
    S = jnp.tile(jnp.eye(hs, dtype=f32), (H, 1))                        # (F, hs)

    # --- batch tiling ---
    bt = _pick_block_batch(B, feat, T, in_item) if block_batch is None \
        else max(1, min(block_batch, B))
    gb = (B + bt - 1) // bt
    Bp = gb * bt
    if Bp != B:
        x = jnp.pad(x, ((0, Bp - B), (0, 0), (0, 0)))   # zero rows -> finite, discarded

    # --- VMEM limit from the actual footprint; capped for v7x's 64 MiB physical VMEM ---
    block_bytes = bt * feat * T * in_item
    const_bytes = H * feat * (in_item + 4) + feat * H * 4 + feat * hs * 4
    footprint = 2 * (block_bytes + bt * hs * 4) + bt * feat * 4 + const_bytes
    vmem_limit = int(min(48 << 20, max(8 << 20, footprint + (4 << 20))))

    out = pl.pallas_call(
        _double_mha_kernel,
        out_shape=jax.ShapeDtypeStruct((gb, bt, hs), out_dtype),
        grid_spec=pltpu.PrefetchScalarGridSpec(
            num_scalar_prefetch=0,
            grid=(gb,),
            in_specs=[
                pl.BlockSpec((bt, feat, T), lambda i: (i, 0, 0)),  # native (B, F, T)
                pl.BlockSpec((H, feat), lambda i: (0, 0)),
                pl.BlockSpec((H, feat), lambda i: (0, 0)),
                pl.BlockSpec((feat, H), lambda i: (0, 0)),
                pl.BlockSpec((feat, hs), lambda i: (0, 0)),
            ],
            # leading (grid) dim squeezed -> last two block dims are full-extent,
            # so any bt gives an unmasked, lane/sublane-legal store.
            out_specs=pl.BlockSpec((pl.Squeezed(), bt, hs), lambda i: (i, 0, 0)),
            scratch_shapes=[pltpu.VMEM((bt, feat), jnp.float32)],
        ),
        compiler_params=pltpu.CompilerParams(
            dimension_semantics=("parallel",),       # megacore split on v7x
            vmem_limit_bytes=vmem_limit,
        ),
    )(x, WqT, E, A, S)
    return out.reshape(Bp, hs)[:B]


def _reference_forward(x, query, att, heads_number):
    """Pure-JAX mirror of the PyTorch eval forward, for validation."""
    B, feat, T = x.shape
    H = heads_number
    hs = feat // H
    ht = jnp.transpose(x, (0, 2, 1))                     # (B, T, F)
    key = ht.reshape(B * T, H, hs)
    value = ht.reshape(B, T, H, hs)
    d_k = query.shape[-1]                                # = H (as in the torch code)
    full = jnp.matmul(key, query) / math.sqrt(d_k)       # (B*T, H, H)
    scores = jnp.diagonal(full, axis1=-2, axis2=-1).reshape(B, T, H)
    p_attn = jax.nn.softmax(scores, axis=-2)
    ct = jnp.sum(value * p_attn[..., None], axis=1)      # (B, H, hs)
    utt = ct.reshape(B, -1)                              # (B, F)
    ht2 = utt.reshape(B, H, hs)
    a_score = jnp.squeeze(jnp.matmul(ht2, att), axis=-1) # (B, H)
    a_score = jax.nn.softmax(a_score, axis=-1)[..., None]
    return jnp.sum(ht2 * a_score, axis=1)                # (B, hs)


if __name__ == "__main__":
    # Small but lane/sublane-friendly shapes: T = 128 lanes, F = 64 sublanes.
    B, feat_in, T, heads = 16, 64, 128, 8
    hs = feat_in // heads

    key0 = jax.random.PRNGKey(0)
    kx, kq, ka = jax.random.split(key0, 3)

    x = jax.random.normal(kx, (B, feat_in, T), dtype=jnp.float32)
    # Deterministic xavier_normal_-style init (gain=1): std = sqrt(2/(fan_in+fan_out)).
    query = jax.random.normal(kq, (hs, heads), dtype=jnp.float32) * math.sqrt(2.0 / (hs + heads))
    att = jax.random.normal(ka, (hs, 1), dtype=jnp.float32) * math.sqrt(2.0 / (hs + 1))

    # TODO(synk): training-time __maskAttention (random -inf head masking) is stochastic
    # dropout-like behaviour; only the eval-mode forward is implemented.

    ref = _reference_forward(x, query, att, heads)

    # Default path: bf16 streaming of the dominant (B, F, T) tensor -> loose check.
    out = double_mha_forward(x, query, att, heads_number=heads)
    out = jax.block_until_ready(out)
    assert out.shape == (B, hs), out.shape
    assert jnp.allclose(out, ref, atol=8e-2, rtol=5e-2), float(jnp.max(jnp.abs(out - ref)))

    # f32 streaming path (tolerance allows the approx EUP reciprocal in the softmaxes).
    out_f32 = double_mha_forward(x, query, att, heads_number=heads, stream_dtype=None)
    out_f32 = jax.block_until_ready(out_f32)
    assert jnp.allclose(out_f32, ref, atol=3e-3, rtol=3e-3), float(jnp.max(jnp.abs(out_f32 - ref)))

    print("KERNEL_OK")
</pallas_src>

<mosaic_0001>
module attributes {stable_mosaic.version = 11 : i64} {
  func.func @_double_mha_kernel(%arg0: i32, %arg1: memref<8x64x128xbf16, #tpu.memory_space<vmem>>, %arg2: memref<8x64xbf16, #tpu.memory_space<vmem>>, %arg3: memref<8x64xf32, #tpu.memory_space<vmem>>, %arg4: memref<64x8xf32, #tpu.memory_space<vmem>>, %arg5: memref<64x8xf32, #tpu.memory_space<vmem>>, %arg6: memref<1x8x8xf32, #tpu.memory_space<vmem>>, %arg7: memref<8x64xf32, #tpu.memory_space<vmem>>) attributes {dimension_semantics = [#tpu.dimension_semantics<parallel>], iteration_bounds = array<i64: 2>, scalar_prefetch = 0 : i64, scratch_operands = 1 : i64, tpu.core_type = #tpu.core_type<tc>, window_params = [{transform_indices = @transform_0, window_bounds = array<i64: 8, 64, 128>}, {pipeline_mode = #tpu.pipeline_mode<synchronous>, transform_indices = @transform_1, window_bounds = array<i64: 8, 64>}, {pipeline_mode = #tpu.pipeline_mode<synchronous>, transform_indices = @transform_2, window_bounds = array<i64: 8, 64>}, {pipeline_mode = #tpu.pipeline_mode<synchronous>, transform_indices = @transform_3, window_bounds = array<i64: 64, 8>}, {pipeline_mode = #tpu.pipeline_mode<synchronous>, transform_indices = @transform_4, window_bounds = array<i64: 64, 8>}, {transform_indices = @transform_5, window_bounds = array<i64: 1, 8, 8>}]} {
    %c0 = arith.constant 0 : index
    %c0_0 = arith.constant 0 : index
    %0 = vector.load %arg2[%c0, %c0_0] : memref<8x64xbf16, #tpu.memory_space<vmem>>, vector<8x64xbf16>
    %c0_1 = arith.constant 0 : index
    %c0_2 = arith.constant 0 : index
    %1 = vector.load %arg3[%c0_1, %c0_2] : memref<8x64xf32, #tpu.memory_space<vmem>>, vector<8x64xf32>
    %c0_i32 = arith.constant 0 : i32
    %c8_i32 = arith.constant 8 : i32
    %2 = arith.addi %c0_i32, %c8_i32 : i32
    %c1_i32 = arith.constant 1 : i32
    scf.for %arg8 = %c0_i32 to %2 step %c1_i32  : i32 {
      %23 = arith.index_cast %arg8 : i32 to index
      %c0_17 = arith.constant 0 : index
      %c0_18 = arith.constant 0 : index
      %24 = vector.load %arg1[%23, %c0_17, %c0_18] : memref<8x64x128xbf16, #tpu.memory_space<vmem>>, vector<1x64x128xbf16>
      %25 = vector.shape_cast %24 : vector<1x64x128xbf16> to vector<64x128xbf16>
      %cst_19 = arith.constant dense<0.000000e+00> : vector<8x128xf32>
      %26 = tpu.matmul %0, %25, %cst_19 {dimension_numbers = #tpu.dot_dimension_numbers<[1], [0], [0], [1], [0, 0, 1, 1], [], []>} : vector<8x64xbf16>, vector<64x128xbf16>, vector<8x128xf32> -> vector<8x128xf32>
      %cst_20 = arith.constant dense<0xFF800000> : vector<8xf32>
      %27 = vector.multi_reduction <maximumf>, %26, %cst_20 [1] : vector<8x128xf32> to vector<8xf32>
      %28 = vector.shape_cast %27 : vector<8xf32> to vector<8x1xf32>
      %29 = vector.broadcast %28 : vector<8x1xf32> to vector<8x128xf32>
      %30 = arith.subf %26, %29 : vector<8x128xf32>
      %31 = math.exp %30 : vector<8x128xf32>
      %cst_21 = arith.constant dense<0.000000e+00> : vector<8xf32>
      %32 = vector.multi_reduction <add>, %31, %cst_21 [1] : vector<8x128xf32> to vector<8xf32>
      %33 = vector.shape_cast %32 : vector<8xf32> to vector<8x1xf32>
      %34 = tpu.reciprocal %33 {approx = true} : vector<8x1xf32> -> vector<8x1xf32>
      %35 = vector.broadcast %34 : vector<8x1xf32> to vector<8x128xf32>
      %36 = arith.mulf %31, %35 : vector<8x128xf32>
      %37 = arith.truncf %36 : vector<8x128xf32> to vector<8x128xbf16>
      %cst_22 = arith.constant dense<0.000000e+00> : vector<8x64xf32>
      %38 = tpu.matmul %37, %25, %cst_22 {dimension_numbers = #tpu.dot_dimension_numbers<[1], [1], [0], [0], [0, 0, 1, 0], [], []>} : vector<8x128xbf16>, vector<64x128xbf16>, vector<8x64xf32> -> vector<8x64xf32>
      %39 = arith.mulf %38, %1 : vector<8x64xf32>
      %cst_23 = arith.constant dense<0.000000e+00> : vector<64xf32>
      %40 = vector.multi_reduction <add>, %39, %cst_23 [0] : vector<8x64xf32> to vector<64xf32>
      %41 = vector.shape_cast %40 : vector<64xf32> to vector<1x64xf32>
      %42 = arith.index_cast %arg8 : i32 to index
      %c0_24 = arith.constant 0 : index
      %43 = vector.load %arg7[%42, %c0_24] : memref<8x64xf32, #tpu.memory_space<vmem>>, vector<1x64xf32>
      tpu.vector_store %arg7[%42, %c0_24], %41 {strides = array<i32>} : memref<8x64xf32, #tpu.memory_space<vmem>>, vector<1x64xf32>,
    }
    %c8_i32_3 = arith.constant 8 : i32
    %c0_4 = arith.constant 0 : index
    %c0_5 = arith.constant 0 : index
    %3 = vector.load %arg7[%c0_4, %c0_5] : memref<8x64xf32, #tpu.memory_space<vmem>>, vector<8x64xf32>
    %c0_6 = arith.constant 0 : index
    %c0_7 = arith.constant 0 : index
    %4 = vector.load %arg4[%c0_6, %c0_7] : memref<64x8xf32, #tpu.memory_space<vmem>>, vector<64x8xf32>
    %cst = arith.constant dense<0.000000e+00> : vector<8x8xf32>
    %5 = tpu.matmul %3, %4, %cst {dimension_numbers = #tpu.dot_dimension_numbers<[1], [0], [0], [1], [0, 0, 1, 1], [], []>} : vector<8x64xf32>, vector<64x8xf32>, vector<8x8xf32> -> vector<8x8xf32>
    %cst_8 = arith.constant dense<0xFF800000> : vector<8xf32>
    %6 = vector.multi_reduction <maximumf>, %5, %cst_8 [1] : vector<8x8xf32> to vector<8xf32>
    %7 = vector.shape_cast %6 : vector<8xf32> to vector<8x1xf32>
    %8 = vector.broadcast %7 : vector<8x1xf32> to vector<8x8xf32>
    %9 = arith.subf %5, %8 : vector<8x8xf32>
    %10 = math.exp %9 : vector<8x8xf32>
    %cst_9 = arith.constant dense<0.000000e+00> : vector<8xf32>
    %11 = vector.multi_reduction <add>, %10, %cst_9 [1] : vector<8x8xf32> to vector<8xf32>
    %12 = vector.shape_cast %11 : vector<8xf32> to vector<8x1xf32>
    %13 = tpu.reciprocal %12 {approx = true} : vector<8x1xf32> -> vector<8x1xf32>
    %14 = vector.broadcast %13 : vector<8x1xf32> to vector<8x8xf32>
    %15 = arith.mulf %10, %14 : vector<8x8xf32>
    %cst_10 = arith.constant dense<0.000000e+00> : vector<8x64xf32>
    %16 = tpu.matmul %15, %1, %cst_10 {dimension_numbers = #tpu.dot_dimension_numbers<[1], [0], [0], [1], [0, 0, 1, 1], [], []>} : vector<8x8xf32>, vector<8x64xf32>, vector<8x64xf32> -> vector<8x64xf32>
    %17 = arith.mulf %3, %16 : vector<8x64xf32>
    %c0_11 = arith.constant 0 : index
    %c0_12 = arith.constant 0 : index
    %18 = vector.load %arg5[%c0_11, %c0_12] : memref<64x8xf32, #tpu.memory_space<vmem>>, vector<64x8xf32>
    %cst_13 = arith.constant dense<0.000000e+00> : vector<8x8xf32>
    %19 = tpu.matmul %17, %18, %cst_13 {dimension_numbers = #tpu.dot_dimension_numbers<[1], [0], [0], [1], [0, 0, 1, 1], [], []>} : vector<8x64xf32>, vector<64x8xf32>, vector<8x8xf32> -> vector<8x8xf32>
    %c0_14 = arith.constant 0 : index
    %c0_15 = arith.constant 0 : index
    %c0_16 = arith.constant 0 : index
    %20 = vector.load %arg6[%c0_14, %c0_15, %c0_16] : memref<1x8x8xf32, #tpu.memory_space<vmem>>, vector<1x8x8xf32>
    %21 = vector.shape_cast %20 : vector<1x8x8xf32> to vector<8x8xf32>
    %22 = vector.shape_cast %19 : vector<8x8xf32> to vector<1x8x8xf32>
    tpu.vector_store %arg6[%c0_14, %c0_15, %c0_16], %22 {strides = array<i32>} : memref<1x8x8xf32, #tpu.memory_space<vmem>>, vector<1x8x8xf32>,
    return
  }
  func.func @transform_0(%arg0: i32) -> (i32, i32, i32) {
    %c0_i32 = arith.constant 0 : i32
    %c0_i32_0 = arith.constant 0 : i32
    %c0_i32_1 = arith.constant 0 : i32
    return %arg0, %c0_i32, %c0_i32_0 : i32, i32, i32
  }
  func.func @transform_1(%arg0: i32) -> (i32, i32) {
    %c0_i32 = arith.constant 0 : i32
    %c0_i32_0 = arith.constant 0 : i32
    %c0_i32_1 = arith.constant 0 : i32
    return %c0_i32, %c0_i32_0 : i32, i32
  }
  func.func @transform_2(%arg0: i32) -> (i32, i32) {
    %c0_i32 = arith.constant 0 : i32
    %c0_i32_0 = arith.constant 0 : i32
    %c0_i32_1 = arith.constant 0 : i32
    return %c0_i32, %c0_i32_0 : i32, i32
  }
  func.func @transform_3(%arg0: i32) -> (i32, i32) {
    %c0_i32 = arith.constant 0 : i32
    %c0_i32_0 = arith.constant 0 : i32
    %c0_i32_1 = arith.constant 0 : i32
    return %c0_i32, %c0_i32_0 : i32, i32
  }
  func.func @transform_4(%arg0: i32) -> (i32, i32) {
    %c0_i32 = arith.constant 0 : i32
    %c0_i32_0 = arith.constant 0 : i32
    %c0_i32_1 = arith.constant 0 : i32
    return %c0_i32, %c0_i32_0 : i32, i32
  }
  func.func @transform_5(%arg0: i32) -> (i32, i32, i32) {
    %c0_i32 = arith.constant 0 : i32
    %c0_i32_0 = arith.constant 0 : i32
    %c0_i32_1 = arith.constant 0 : i32
    return %arg0, %c0_i32, %c0_i32_0 : i32, i32, i32
  }
}

</mosaic_0001>

<llo_original>
// kernel: double_mha_forward.1
$region0: #{double_mha_forward.1}
  #allocation0 [shape = 'u32[]', space=smem, size = 0x4, offset = 0x4, fixed_abs, tag = 'smem constant byte address 0x4 - core index']
  #allocation1 [shape = 'u32[72,128]{1,0:T(1,128)}', space=vmem, size = 0x9000, scoped, tag = 'internal scratch']
  #allocation2 [shape = 'f32[8,64]{1,0:T(8,128)}', space=vmem, size = 0x1000, scoped, tag = 'scratch operand']
  %s0 = inlined_call_operand.vmem [shape: bf16[16,64,128], index: 0, kind: input, shape index: {}]
  %s1 = inlined_call_operand.vmem [shape: bf16[8,64], index: 1, kind: input, shape index: {}]
  %s2 = inlined_call_operand.vmem [shape: f32[8,64], index: 2, kind: input, shape index: {}]
  %s3 = inlined_call_operand.vmem [shape: f32[64,8], index: 3, kind: input, shape index: {}]
  %s4 = inlined_call_operand.vmem [shape: f32[64,8], index: 4, kind: input, shape index: {}]
  %s5 = inlined_call_operand.vmem [shape: f32[2,8,8], index: 5, kind: output, shape index: {}]
  %s6 = sld [smem:[#allocation0]]
  $region60: #{double_mha_forward.1} parent=0
    _
  %s8 = ssub.s32 1, %s6
  %s9 = scalar_select 0, %s8, %s6
  loop: start=0, step=1, limit=4
  $region2: #{double_mha_forward.1} parent=0 // loop_pre_header
    _
  $region3: #{double_mha_forward.1} parent=0 // loop_header
    %s11 = sphi 0, %s15
    %p12 = scmp.ge.s32.totalorder %s11, 4
    %s21 = sphi 0, %s23
    %s24 = sphi 0, %s21
    %s25 = sphi 0, %s24
    %s41 = sphi 0, %s25
    %s45 = sphi 0, %s45
    %s47 = sphi 0, %s45
    %s48 = sphi 0, %s47
    %s62 = sphi 0, %s48
    %s66 = sphi 0, %s66
    %s68 = sphi 0, %s66
    %s69 = sphi 0, %s68
    %s83 = sphi 0, %s69
    %s87 = sphi 0, %s87
    %s89 = sphi 0, %s87
    %s90 = sphi 0, %s89
    %s104 = sphi 0, %s90
    %s108 = sphi 0, %s108
    %s110 = sphi 0, %s108
    %s111 = sphi 0, %s110
    %s125 = sphi 0, %s111
    %s131 = sphi 0, %s133
    %s134 = sphi 0, %s131
    %s135 = sphi 0, %s134
    %s151 = sphi 0, %s135
  $region4: #{double_mha_forward.1} parent=0 // loop_header_branch
    %14 = sbr.rel (%p12) target = $region8
  $region5: #{double_mha_forward.1} parent=0 // loop_body
    %s16 = ssub.s32 %s11, 1
    %s17 = ssub.s32 %s11, 2
    %s18 = sadd.s32 %s11, 1
    %s19 = ssub.s32 %s11, %s18
    %p20 = scmp.eq.s32.totalorder %s19, 0
    %s22 = sadd.s32 %s21, 1
    %s23 = scalar_select %p20, %s21, %s22
    %p26 = pneg %p20
    %p27 = scmp.eq.s32.totalorder %s11, 1
    %p28 = por %p26, %p27
    %p29 = scmp.ne.s32.totalorder %s21, %s24
    %p30 = scmp.eq.s32.totalorder %s11, 0
    %p31 = por %p29, %p30
    %p32 = scmp.ne.s32.totalorder %s21, %s24
    %p33 = scmp.eq.s32.totalorder %s16, 1
    %p34 = por %p32, %p33
    %p35 = scmp.ne.s32.totalorder %s24, %s25
    %p36 = scmp.eq.s32.totalorder %s16, 0
    %p37 = por %p35, %p36
    %p38 = scmp.ne.s32.totalorder %s24, %s25
    %p39 = scmp.eq.s32.totalorder %s17, 1
    %p40 = por %p38, %p39
    %p42 = scmp.ne.s32.totalorder %s25, %s41
    %p43 = scmp.eq.s32.totalorder %s17, 0
    %p44 = por %p42, %p43
    %s46 = sadd.s32 %s45, 1
    %p49 = scmp.eq.s32.totalorder %s11, 1
    %p50 = scmp.ne.s32.totalorder %s45, %s47
    %p51 = scmp.eq.s32.totalorder %s11, 0
    %p52 = por %p50, %p51
    %p53 = scmp.ne.s32.totalorder %s45, %s47
    %p54 = scmp.eq.s32.totalorder %s16, 1
    %p55 = por %p53, %p54
    %p56 = scmp.ne.s32.totalorder %s47, %s48
    %p57 = scmp.eq.s32.totalorder %s16, 0
    %p58 = por %p56, %p57
    %p59 = scmp.ne.s32.totalorder %s47, %s48
    %p60 = scmp.eq.s32.totalorder %s17, 1
    %p61 = por %p59, %p60
    %p63 = scmp.ne.s32.totalorder %s48, %s62
    %p64 = scmp.eq.s32.totalorder %s17, 0
    %p65 = por %p63, %p64
    %s67 = sadd.s32 %s66, 1
    %p70 = scmp.eq.s32.totalorder %s11, 1
    %p71 = scmp.ne.s32.totalorder %s66, %s68
    %p72 = scmp.eq.s32.totalorder %s11, 0
    %p73 = por %p71, %p72
    %p74 = scmp.ne.s32.totalorder %s66, %s68
    %p75 = scmp.eq.s32.totalorder %s16, 1
    %p76 = por %p74, %p75
    %p77 = scmp.ne.s32.totalorder %s68, %s69
    %p78 = scmp.eq.s32.totalorder %s16, 0
    %p79 = por %p77, %p78
    %p80 = scmp.ne.s32.totalorder %s68, %s69
    %p81 = scmp.eq.s32.totalorder %s17, 1
    %p82 = por %p80, %p81
    %p84 = scmp.ne.s32.totalorder %s69, %s83
    %p85 = scmp.eq.s32.totalorder %s17, 0
    %p86 = por %p84, %p85
    %s88 = sadd.s32 %s87, 1
    %p91 = scmp.eq.s32.totalorder %s11, 1
    %p92 = scmp.ne.s32.totalorder %s87, %s89
    %p93 = scmp.eq.s32.totalorder %s11, 0
    %p94 = por %p92, %p93
    %p95 = scmp.ne.s32.totalorder %s87, %s89
    %p96 = scmp.eq.s32.totalorder %s16, 1
    %p97 = por %p95, %p96
    %p98 = scmp.ne.s32.totalorder %s89, %s90
    %p99 = scmp.eq.s32.totalorder %s16, 0
    %p100 = por %p98, %p99
    %p101 = scmp.ne.s32.totalorder %s89, %s90
    %p102 = scmp.eq.s32.totalorder %s17, 1
    %p103 = por %p101, %p102
    %p105 = scmp.ne.s32.totalorder %s90, %s104
    %p106 = scmp.eq.s32.totalorder %s17, 0
    %p107 = por %p105, %p106
    %s109 = sadd.s32 %s108, 1
    %p112 = scmp.eq.s32.totalorder %s11, 1
    %p113 = scmp.ne.s32.totalorder %s108, %s110
    %p114 = scmp.eq.s32.totalorder %s11, 0
    %p115 = por %p113, %p114
    %p116 = scmp.ne.s32.totalorder %s108, %s110
    %p117 = scmp.eq.s32.totalorder %s16, 1
    %p118 = por %p116, %p117
    %p119 = scmp.ne.s32.totalorder %s110, %s111
    %p120 = scmp.eq.s32.totalorder %s16, 0
    %p121 = por %p119, %p120
    %p122 = scmp.ne.s32.totalorder %s110, %s111
    %p123 = scmp.eq.s32.totalorder %s17, 1
    %p124 = por %p122, %p123
    %p126 = scmp.ne.s32.totalorder %s111, %s125
    %p127 = scmp.eq.s32.totalorder %s17, 0
    %p128 = por %p126, %p127
    %s129 = ssub.s32 %s11, %s18
    %p130 = scmp.eq.s32.totalorder %s129, 0
    %s132 = sadd.s32 %s131, 1
    %s133 = scalar_select %p130, %s131, %s132
    %p136 = pneg %p130
    %p137 = scmp.eq.s32.totalorder %s11, 1
    %p138 = por %p136, %p137
    %p139 = scmp.ne.s32.totalorder %s131, %s134
    %p140 = scmp.eq.s32.totalorder %s11, 0
    %p141 = por %p139, %p140
    %p142 = scmp.ne.s32.totalorder %s131, %s134
    %p143 = scmp.eq.s32.totalorder %s16, 1
    %p144 = por %p142, %p143
    %p145 = scmp.ne.s32.totalorder %s134, %s135
    %p146 = scmp.eq.s32.totalorder %s16, 0
    %p147 = por %p145, %p146
    %p148 = scmp.ne.s32.totalorder %s134, %s135
    %p149 = scmp.eq.s32.totalorder %s17, 1
    %p150 = por %p148, %p149
    %p152 = scmp.ne.s32.totalorder %s135, %s151
    %p153 = scmp.eq.s32.totalorder %s17, 0
    %p154 = por %p152, %p153
    %p155 = scmp.le.s32.totalorder 1, %s11
    %p156 = scmp.lt.s32.totalorder %s11, 3
    %p157 = pnand %p155, %p156
    %p158 = pneg %p157
    // Predicated region
    $region9: #{double_mha_forward.1} parent=5 // pred_check
      _
    $region10: #{double_mha_forward.1} parent=5 // pred_check_branch
      %160 = sbr.rel (%p157) target = $region12
    $region11: #{double_mha_forward.1} parent=5 // pred_region
      %s161 = ssub.s32 %s11, 1
      // Predicated region
      $region13: #{double_mha_forward.1} parent=11 // pred_check
        %p162 = pneg %p58
      $region14: #{double_mha_forward.1} parent=11 // pred_check_branch
        %164 = sbr.rel (%p162) target = $region16
      $region15: #{double_mha_forward.1} parent=11 // pred_region
        _
      $region16: #{double_mha_forward.1} parent=11 // pred_fallthru
        _
      // Predicated region
      $region17: #{double_mha_forward.1} parent=11 // pred_check
        %p165 = pneg %p79
      $region18: #{double_mha_forward.1} parent=11 // pred_check_branch
        %167 = sbr.rel (%p165) target = $region20
      $region19: #{double_mha_forward.1} parent=11 // pred_region
        _
      $region20: #{double_mha_forward.1} parent=11 // pred_fallthru
        _
      // Predicated region
      $region21: #{double_mha_forward.1} parent=11 // pred_check
        %p168 = pneg %p100
      $region22: #{double_mha_forward.1} parent=11 // pred_check_branch
        %170 = sbr.rel (%p168) target = $region24
      $region23: #{double_mha_forward.1} parent=11 // pred_region
        _
      $region24: #{double_mha_forward.1} parent=11 // pred_fallthru
        _
      // Predicated region
      $region25: #{double_mha_forward.1} parent=11 // pred_check
        %p171 = pneg %p121
      $region26: #{double_mha_forward.1} parent=11 // pred_check_branch
        %173 = sbr.rel (%p171) target = $region28
      $region27: #{double_mha_forward.1} parent=11 // pred_region
        _
      $region28: #{double_mha_forward.1} parent=11 // pred_fallthru
        _
    $region12: #{double_mha_forward.1} parent=5 // pred_fallthru
      _
    %p174 = scmp.lt.s32.totalorder %s11, 2
    // Predicated region
    $region29: #{double_mha_forward.1} parent=5 // pred_check
      %p175 = pneg %p174
    $region30: #{double_mha_forward.1} parent=5 // pred_check_branch
      %177 = sbr.rel (%p175) target = $region32
    $region31: #{double_mha_forward.1} parent=5 // pred_region
      // Predicated region
      $region33: #{double_mha_forward.1} parent=31 // pred_check
        %p178 = pneg %p31
      $region34: #{double_mha_forward.1} parent=31 // pred_check_branch
        %180 = sbr.rel (%p178) target = $region36
      $region35: #{double_mha_forward.1} parent=31 // pred_region
        %s181 = smul.u32 8, %s11
        %p182 = scmp.lt.s32.totalorder %s181, 15
        %s183 = scalar_select %p182, %s181, 15
        %s184 = smul.addr %s183, 8
        %s185 = smul.addr %s184, 4
        %s186 = scalar_lea.vmem %s0, %s185
        %s187 = smul.u32 8, %s11
      $region36: #{double_mha_forward.1} parent=31 // pred_fallthru
        _
    $region32: #{double_mha_forward.1} parent=5 // pred_fallthru
      _
    %p188 = scmp.le.s32.totalorder 1, %s11
    %p189 = scmp.lt.s32.totalorder %s11, 3
    %p190 = pnand %p188, %p189
    %p191 = pneg %p190
    // Predicated region
    $region37: #{double_mha_forward.1} parent=5 // pred_check
      _
    $region38: #{double_mha_forward.1} parent=5 // pred_check_branch
      %193 = sbr.rel (%p190) target = $region40
    $region39: #{double_mha_forward.1} parent=5 // pred_region
      %s194 = ssub.s32 %s11, 1
      %s195 = smul.u32 8, %s16
      %p196 = scmp.lt.s32.totalorder %s195, 15
      %s197 = scalar_select %p196, %s195, 15
      %s198 = smul.addr %s197, 8
      %s199 = smul.addr %s198, 4
      %s200 = scalar_lea.vmem %s0, %s199
      %p201 = pneg %p37
      %p202 = pneg %p34
      %p203 = pneg %p58
      %p204 = pneg %p55
      %p205 = pneg %p79
      %p206 = pneg %p76
      %p207 = pneg %p100
      %p208 = pneg %p97
      %p209 = pneg %p121
      %p210 = pneg %p118
      %p211 = pneg %p147
      %p212 = pneg %p144
      %p213 = scmp.lt.s32.totalorder %s16, 1
      %s214 = scalar_select %p213, %s16, 1
      %s215 = smul.addr %s214, 8
      %s216 = scalar_lea.vmem %s5, %s215
      %s217 = smul.u32 8, %s16
      %p218 = scmp.lt.s32.totalorder %s217, 15
      %s219 = scalar_select %p218, %s217, 15
      %s220 = smul.addr %s219, 8
      %s221 = smul.addr %s220, 4
      %s222 = scalar_lea.vmem %s0, %s221
      %s223 = smul.u32 8, %s16
      %p224 = scmp.lt.s32.totalorder %s16, 1
      %s225 = scalar_select %p224, %s16, 1
      %s226 = smul.addr %s225, 8
      %s227 = scalar_lea.vmem %s5, %s226
      %v229 = vld [vmem:[%s1] sm:$0xf]
      %v230 = vld [vmem:[%s2] sm:$0xff]
      loop: start=0, step=1, limit=8
      $region41: #{double_mha_forward.1} parent=39 // loop_pre_header
        _
      $region42: #{double_mha_forward.1} parent=39 // loop_header
        %s232 = sphi 0, %s236
        %p233 = scmp.ge.s32.totalorder %s232, 8
      $region43: #{double_mha_forward.1} parent=39 // loop_header_branch
        %235 = sbr.rel (%p233) target = $region47
      $region44: #{double_mha_forward.1} parent=39 // loop_body
        %s237 = smul.u32 %s232, 8
        %s238 = smul.addr %s237, 4
        %s239 = scalar_lea.vmem %s222, %s238
        %v240 = vld [vmem:[%s239] sm:$0xf]
        %v241 = vld [vmem:[%s239 + $0x4] sm:$0xf]
        %v242 = vld [vmem:[%s239 + $0x8] sm:$0xf]
        %v243 = vld [vmem:[%s239 + $0xc] sm:$0xf]
        %v244 = vld [vmem:[%s239 + $0x10] sm:$0xf]
        %v245 = vld [vmem:[%s239 + $0x14] sm:$0xf]
        %v246 = vld [vmem:[%s239 + $0x18] sm:$0xf]
        %v247 = vld [vmem:[%s239 + $0x1c] sm:$0xf]
        %v256 = vunpack.c.l.b16 %v240
        %v257 = vunpack.c.l.b16 %v241
        %v258 = vunpack.c.l.b16 %v242
        %v259 = vunpack.c.l.b16 %v243
        %v260 = vunpack.c.l.b16 %v244
        %v261 = vunpack.c.l.b16 %v245
        %v262 = vunpack.c.l.b16 %v246
        %v263 = vunpack.c.l.b16 %v247
        %v264 = vpack.c.b16 %v257, %v256
        %v265 = vpack.c.b16 %v259, %v258
        %v266 = vpack.c.b16 %v261, %v260
        %v267 = vpack.c.b16 %v263, %v262
        %vm272 = vcmask 523264
        %v274 = vsel %vm272, %v229, 0
        %276 = vmatpush.bf16.msra.mxu0 0
        %277 = vmatpush.bf16.msra.mxu0 0
        %278 = vmatpush.bf16.msra.mxu0 0
        %279 = vmatpush.bf16.msra.mxu0 0
        %280 = vmatpush.bf16.msra.mxu0 %v267
        %281 = vmatpush.bf16.msra.mxu0 %v266
        %282 = vmatpush.bf16.msra.mxu0 %v265
        %283 = vmatpush.bf16.msra.mxu0 %v264
        %284 = vmatmul.bf16.gmra.mxu0 %v274
        %v285 = vpop.f32.mrf.mxu0
        %v286 = vadd.f32 0.0, %v285
        %v287 = vpop.f32.mrf.mxu0
        %288 = vdwg.mxu0
        %289 = vmax.xlane.f32.xlu0 %v286
        %v290 = vpop.xlane.xlu0 %289
        %v291 = vsub.f32 %v286, %v290
        %v292 = vmul.f32 %v291, 1.442695
        %v293 = vpow.pop %v292
        %294 = vadd.xlane.f32.xlu0 %v293
        %v295 = vpop.xlane.xlu0 %294
        %v296 = vrcp.pop %v295
        %v297 = vmul.f32 %v293, %v296
        %v298 = vpack.c.bf16 %v297, %v297
        %299 = vmatpush.bf16.xpose.msra.mxu0 0
        %300 = vmatpush.bf16.xpose.msra.mxu0 0
        %301 = vmatpush.bf16.xpose.msra.mxu0 0
        %302 = vmatpush.bf16.xpose.msra.mxu0 0
        %303 = vmatpush.bf16.xpose.msra.mxu0 %v267
        %304 = vmatpush.bf16.xpose.msra.mxu0 %v266
        %305 = vmatpush.bf16.xpose.msra.mxu0 %v265
        %306 = vmatpush.bf16.xpose.msra.mxu0 %v264
        %307 = vmatmul.bf16.gmra.mxu0 %v298
        %v308 = vpop.f32.mrf.mxu0
        %v309 = vadd.f32 0.0, %v308
        %v310 = vpop.f32.mrf.mxu0
        %311 = vdwg.mxu0
        %v312 = vmul.f32 %v309, %v230
        %v313 = vsel %vm272, %v312, 0.0
        %v314 = vrot.slane %v313, 4
        %v315 = vadd.f32 %v313, %v314
        %v316 = vrot.slane %v315, 2
        %v317 = vadd.f32 %v315, %v316
        %v318 = vrot.slane %v317, 1
        %v319 = vadd.f32 %v317, %v318
        %s320 = scalar_lea.vmem [#allocation2], %s232
        %vm321 = vcmask 516096
        %322 = vst.msk [vmem:[%s320] sm:$0x1] %vm321, %v319
      $region45: #{double_mha_forward.1} parent=39 // loop_footer
        %s236 = sadd.s32 1, %s232
      $region46: #{double_mha_forward.1} parent=39 // loop_footer_branch
        %231 = sbr.rel target = $region42
      $region47: #{double_mha_forward.1} parent=39 // loop_exit
        _
      %v323 = vld [vmem:[#allocation2] sm:$0xff]
      %v324 = vld [vmem:[%s3] sm:$0xff]
      %v325 = vld [vmem:[%s3 + $0x8] sm:$0xff]
      %v326 = vld [vmem:[%s3 + $0x10] sm:$0xff]
      %v327 = vld [vmem:[%s3 + $0x18] sm:$0xff]
      %v328 = vld [vmem:[%s3 + $0x20] sm:$0xff]
      %v329 = vld [vmem:[%s3 + $0x28] sm:$0xff]
      %v330 = vld [vmem:[%s3 + $0x30] sm:$0xff]
      %v331 = vld [vmem:[%s3 + $0x38] sm:$0xff]
      %vm332 = vcmask 523264
      %v334 = vsel %vm332, %v323, 0
      %336 = vmatpush.msra.mxu0 0.0
      %337 = vmatpush.msra.mxu0 0.0
      %338 = vmatpush.msra.mxu0 0.0
      %339 = vmatpush.msra.mxu0 0.0
      %340 = vmatpush.msra.mxu0 0.0
      %341 = vmatpush.msra.mxu0 0.0
      %342 = vmatpush.msra.mxu0 0.0
      %343 = vmatpush.msra.mxu0 0.0
      %344 = vmatpush.msra.mxu0 %v331
      %345 = vmatpush.msra.mxu0 %v330
      %346 = vmatpush.msra.mxu0 %v329
      %347 = vmatpush.msra.mxu0 %v328
      %348 = vmatpush.msra.mxu0 %v327
      %349 = vmatpush.msra.mxu0 %v326
      %350 = vmatpush.msra.mxu0 %v325
      %351 = vmatpush.msra.mxu0 %v324
      %352 = vmatmul.f32.gmra.mxu0 %v334
      %v353 = vpop.f32.mrf.mxu0
      %v354 = vadd.f32 0.0, %v353
      %355 = vdwg.mxu0
      %vm356 = vcmask 64512
      %v357 = vsel %vm356, %v354, -inf
      %358 = vmax.xlane.f32.xlu0 %v357
      %v359 = vpop.xlane.xlu0 %358
      %v360 = vsub.f32 %v354, %v359
      %v361 = vmul.f32 %v360, 1.442695
      %v362 = vpow.pop %v361
      %v363 = vsel %vm356, %v362, 0.0
      %364 = vadd.xlane.f32.xlu0 %v363
      %v365 = vpop.xlane.xlu0 %364
      %v366 = vrcp.pop %v365
      %v367 = vmul.f32 %v362, %v366
      %v369 = vsel %vm356, %v367, 0
      %371 = vmatpush.msra.mxu0 0.0
      %372 = vmatpush.msra.mxu0 0.0
      %373 = vmatpush.msra.mxu0 0.0
      %374 = vmatpush.msra.mxu0 0.0
      %375 = vmatpush.msra.mxu0 0.0
      %376 = vmatpush.msra.mxu0 0.0
      %377 = vmatpush.msra.mxu0 0.0
      %378 = vmatpush.msra.mxu0 0.0
      %379 = vmatpush.msra.mxu0 0.0
      %380 = vmatpush.msra.mxu0 0.0
      %381 = vmatpush.msra.mxu0 0.0
      %382 = vmatpush.msra.mxu0 0.0
      %383 = vmatpush.msra.mxu0 0.0
      %384 = vmatpush.msra.mxu0 0.0
      %385 = vmatpush.msra.mxu0 0.0
      %386 = vmatpush.msra.mxu0 %v230
      %387 = vmatmul.f32.gmra.mxu0 %v369
      %v388 = vpop.f32.mrf.mxu0
      %v389 = vadd.f32 0.0, %v388
      %390 = vdwg.mxu0
      %v391 = vmul.f32 %v323, %v389
      %v392 = vld [vmem:[%s4] sm:$0xff]
      %v393 = vld [vmem:[%s4 + $0x8] sm:$0xff]
      %v394 = vld [vmem:[%s4 + $0x10] sm:$0xff]
      %v395 = vld [vmem:[%s4 + $0x18] sm:$0xff]
      %v396 = vld [vmem:[%s4 + $0x20] sm:$0xff]
      %v397 = vld [vmem:[%s4 + $0x28] sm:$0xff]
      %v398 = vld [vmem:[%s4 + $0x30] sm:$0xff]
      %v399 = vld [vmem:[%s4 + $0x38] sm:$0xff]
      %v401 = vsel %vm332, %v391, 0
      %403 = vmatpush.msra.mxu0 0.0
      %404 = vmatpush.msra.mxu0 0.0
      %405 = vmatpush.msra.mxu0 0.0
      %406 = vmatpush.msra.mxu0 0.0
      %407 = vmatpush.msra.mxu0 0.0
      %408 = vmatpush.msra.mxu0 0.0
      %409 = vmatpush.msra.mxu0 0.0
      %410 = vmatpush.msra.mxu0 0.0
      %411 = vmatpush.msra.mxu0 %v399
      %412 = vmatpush.msra.mxu0 %v398
      %413 = vmatpush.msra.mxu0 %v397
      %414 = vmatpush.msra.mxu0 %v396
      %415 = vmatpush.msra.mxu0 %v395
      %416 = vmatpush.msra.mxu0 %v394
      %417 = vmatpush.msra.mxu0 %v393
      %418 = vmatpush.msra.mxu0 %v392
      %419 = vmatmul.f32.gmra.mxu0 %v401
      %v420 = vpop.f32.mrf.mxu0
      %v421 = vadd.f32 0.0, %v420
      %422 = vdwg.mxu0
      %423 = vst.msk [vmem:[%s227] sm:$0xff] %vm356, %v421
      %p424 = scmp.lt.s32.totalorder %s16, 1
      %s425 = scalar_select %p424, %s16, 1
      %s426 = smul.addr %s425, 8
      %s427 = scalar_lea.vmem %s5, %s426
      // Predicated region
      $region48: #{double_mha_forward.1} parent=39 // pred_check
        %p428 = pneg %p144
      $region49: #{double_mha_forward.1} parent=39 // pred_check_branch
        %430 = sbr.rel (%p428) target = $region51
      $region50: #{double_mha_forward.1} parent=39 // pred_region
        _
      $region51: #{double_mha_forward.1} parent=39 // pred_fallthru
        _
    $region40: #{double_mha_forward.1} parent=5 // pred_fallthru
      _
    %p431 = scmp.le.s32.totalorder 2, %s11
    // Predicated region
    $region52: #{double_mha_forward.1} parent=5 // pred_check
      %p432 = pneg %p431
    $region53: #{double_mha_forward.1} parent=5 // pred_check_branch
      %434 = sbr.rel (%p432) target = $region55
    $region54: #{double_mha_forward.1} parent=5 // pred_region
      %s435 = ssub.s32 %s11, 2
      // Predicated region
      $region56: #{double_mha_forward.1} parent=54 // pred_check
        %p436 = pneg %p150
      $region57: #{double_mha_forward.1} parent=54 // pred_check_branch
        %438 = sbr.rel (%p436) target = $region59
      $region58: #{double_mha_forward.1} parent=54 // pred_region
        %p439 = scmp.lt.s32.totalorder %s17, 1
        %s440 = scalar_select %p439, %s17, 1
        %s441 = smul.addr %s440, 8
        %s442 = scalar_lea.vmem %s5, %s441
      $region59: #{double_mha_forward.1} parent=54 // pred_fallthru
        _
    $region55: #{double_mha_forward.1} parent=5 // pred_fallthru
      _
  $region6: #{double_mha_forward.1} parent=0 // loop_footer
    %s15 = sadd.s32 1, %s11
  $region7: #{double_mha_forward.1} parent=0 // loop_footer_branch
    %10 = sbr.rel target = $region3
  $region8: #{double_mha_forward.1} parent=0 // loop_exit
    _

</llo_original>
